<compile_context>
chip_gen: v7x
topology: tpu7x:2x2x1
jax: 0.10.0
libtpu: 0.0.40
codegen_flags: <defaults>
</compile_context>

<pallas_src>
import functools

import jax
import jax.numpy as jnp
from jax.experimental import pallas as pl
from jax.experimental.pallas import tpu as pltpu


# -----------------------------------------------------------------------------
# Hardware-aware budgets & tiling
# -----------------------------------------------------------------------------
def _vmem_budget():
    """(vmem_limit_bytes, streaming-block cap) derived from physical VMEM."""
    try:
        phys = int(pltpu.get_tpu_info().vmem_capacity_bytes)
    except Exception:
        phys = 64 << 20                      # conservative: v7x per-TensorCore
    vmem_limit = min(phys * 3 // 4, 96 << 20)      # ~48 MiB v7x, ~96 MiB v5e/v6e
    stream_cap = (4 << 20) if phys <= (64 << 20) else (8 << 20)
    return vmem_limit, stream_cap


def _round_up(x, m):
    return (x + m - 1) // m * m


def _pick_spatial_tile(s_pad, c, dsize, cap_bytes):
    """Largest multiple of 128 dividing s_pad with c*tile*dsize <= cap (>=128).

    s_pad is always a multiple of 128, so a valid tile always exists and the
    old 'fall back to full S' escape hatch (a v7x VMEM hazard) is gone.
    """
    max_tile = min(s_pad, max(128, cap_bytes // max(1, c * dsize)))
    best, t = 128, 128
    while t <= max_tile:
        if s_pad % t == 0:
            best = t
        t += 128
    return best


# -----------------------------------------------------------------------------
# FUSED kernel: stream x once; pool, gate, and apply from the VMEM-resident
# per-batch output slab.  Grid (B, T): batch "parallel", spatial "arbitrary".
# -----------------------------------------------------------------------------
def _ffm_fused_kernel(x_ref, w1_ref, b1_ref, w2_ref, b2_ref, o_ref, acc_ref,
                      *, inv_s, s_tile):
    # x_ref : (C, s_tile)  streamed spatial tile of batch b (native dtype)
    # w*_ref: (C, C) f32   1x1-conv weights (out, in);  b*_ref: (C, 1) f32
    # o_ref : (C, S_pad)   per-batch output slab, VMEM-resident across t
    # acc_ref:(C, 1) f32   running spatial sum for batch b
    t = pl.program_id(1)

    @pl.when(t == 0)
    def _init():
        acc_ref[...] = jnp.zeros_like(acc_ref)

    xt = x_ref[...]
    acc_ref[...] += jnp.sum(xt.astype(jnp.float32), axis=1, keepdims=True)

    # Stash this tile into the output slab so x is never re-read from HBM.
    off = pl.multiple_of(t * s_tile, 128)          # lane-aligned dynamic store
    o_ref[:, pl.ds(off, s_tile)] = xt.astype(o_ref.dtype)

    @pl.when(t == pl.num_programs(1) - 1)
    def _finalize():
        pooled = acc_ref[...] * inv_s                                  # (C, 1)
        h = jnp.dot(w1_ref[...], pooled,
                    preferred_element_type=jnp.float32) + b1_ref[...]
        h = jnp.maximum(h, 0.0)
        g = jnp.dot(w2_ref[...], h,
                    preferred_element_type=jnp.float32) + b2_ref[...]
        gate = 1.0 + jax.nn.sigmoid(g)                                 # (C, 1)
        o_ref[...] = (o_ref[...].astype(jnp.float32) * gate).astype(o_ref.dtype)


def _ffm_fused(x3, w1, b1, w2, b2, *, s_tile, true_s, vmem_limit):
    B, C, S_pad = x3.shape
    T = S_pad // s_tile
    kern = functools.partial(_ffm_fused_kernel,
                             inv_s=1.0 / float(true_s), s_tile=s_tile)
    return pl.pallas_call(
        kern,
        out_shape=jax.ShapeDtypeStruct((B, C, S_pad), x3.dtype),
        grid=(B, T),
        in_specs=[
            pl.BlockSpec((None, C, s_tile), lambda b, t: (b, 0, t)),
            pl.BlockSpec((C, C), lambda b, t: (0, 0)),   # constant index ->
            pl.BlockSpec((C, 1), lambda b, t: (0, 0)),   # DMA'd once, resident
            pl.BlockSpec((C, C), lambda b, t: (0, 0)),
            pl.BlockSpec((C, 1), lambda b, t: (0, 0)),
        ],
        out_specs=pl.BlockSpec((None, C, S_pad), lambda b, t: (b, 0, 0)),
        scratch_shapes=[pltpu.VMEM((C, 1), jnp.float32)],
        input_output_aliases={0: 0},                     # out reuses x's buffer
        compiler_params=pltpu.CompilerParams(
            dimension_semantics=("parallel", "arbitrary"),
            vmem_limit_bytes=int(vmem_limit)),
    )(x3, w1, b1, w2, b2)


# -----------------------------------------------------------------------------
# TWO-PASS fallback (per-batch slab does not fit VMEM).
# Kernel A: pooled spatial sums only (gate MLP hoisted out to plain JAX).
# -----------------------------------------------------------------------------
def _pool_sum_kernel(x_ref, sum_ref, acc_ref):
    t = pl.program_id(1)

    @pl.when(t == 0)
    def _init():
        acc_ref[...] = jnp.zeros_like(acc_ref)

    acc_ref[...] += jnp.sum(x_ref[...].astype(jnp.float32), axis=1,
                            keepdims=True)

    @pl.when(t == pl.num_programs(1) - 1)
    def _emit():
        sum_ref[...] = acc_ref[...]


def _pool_sums(x3, *, s_tile, vmem_limit):
    B, C, S_pad = x3.shape
    T = S_pad // s_tile
    return pl.pallas_call(
        _pool_sum_kernel,
        out_shape=jax.ShapeDtypeStruct((B, C, 1), jnp.float32),
        grid=(B, T),
        in_specs=[pl.BlockSpec((None, C, s_tile), lambda b, t: (b, 0, t))],
        out_specs=pl.BlockSpec((None, C, 1), lambda b, t: (b, 0, 0)),
        scratch_shapes=[pltpu.VMEM((C, 1), jnp.float32)],
        compiler_params=pltpu.CompilerParams(
            dimension_semantics=("parallel", "arbitrary"),
            vmem_limit_bytes=int(vmem_limit)),
    )(x3)


# Kernel B: streamed apply  out = x * (1 + gate), gate (B, C, 1) resident.
def _apply_gate_kernel(x_ref, gate_ref, o_ref):
    b = pl.program_id(0)
    g = gate_ref[b]                                            # (C, 1) f32
    o_ref[...] = (x_ref[...].astype(jnp.float32) * g).astype(o_ref.dtype)


def _apply_gate(x3, gate, *, s_tile, vmem_limit):
    B, C, S_pad = x3.shape
    T = S_pad // s_tile
    return pl.pallas_call(
        _apply_gate_kernel,
        out_shape=jax.ShapeDtypeStruct((B, C, S_pad), x3.dtype),
        grid=(B, T),
        in_specs=[
            pl.BlockSpec((None, C, s_tile), lambda b, t: (b, 0, t)),
            pl.BlockSpec((B, C, 1), lambda b, t: (0, 0, 0)),   # tiny, resident
        ],
        out_specs=pl.BlockSpec((None, C, s_tile), lambda b, t: (b, 0, t)),
        input_output_aliases={0: 0},
        compiler_params=pltpu.CompilerParams(
            dimension_semantics=("parallel", "parallel"),
            vmem_limit_bytes=int(vmem_limit)),
    )(x3, gate)


# -----------------------------------------------------------------------------
# Wrapper, params, reference
# -----------------------------------------------------------------------------
@functools.partial(jax.jit, static_argnames=("force_two_pass",))
def ffm_forward(x_nchw, params, force_two_pass=False):
    B, C, H, W = x_nchw.shape
    S = H * W
    S_pad = _round_up(S, 128)                 # always lane-dense, never "full S"

    x3 = x_nchw.reshape(B, C, S)              # native dtype; spatial on lanes
    if S_pad != S:
        x3 = jnp.pad(x3, ((0, 0), (0, 0), (0, S_pad - S)))   # zeros: mean-safe
    dsize = x3.dtype.itemsize

    w1 = params["w1"].reshape(C, C).astype(jnp.float32)       # (out, in)
    b1 = params["b1"].reshape(C, 1).astype(jnp.float32)
    w2 = params["w2"].reshape(C, C).astype(jnp.float32)
    b2 = params["b2"].reshape(C, 1).astype(jnp.float32)

    vmem_limit, stream_cap = _vmem_budget()
    budget = int(vmem_limit * 0.8)            # leave headroom under the limit

    # Fused-path VMEM plan: double-buffered output slabs + (conservatively
    # double-buffered) weights + minimal double-buffered x stream blocks.
    slab_bytes = C * S_pad * dsize
    w_bytes = 2 * 2 * (C * C + C) * 4
    fused_fixed = 2 * slab_bytes + w_bytes
    min_stream = 2 * C * 128 * dsize
    fused_ok = (not force_two_pass) and (fused_fixed + min_stream <= budget)

    if fused_ok:
        x_cap = min(stream_cap, (budget - fused_fixed) // 2)
        s_tile = _pick_spatial_tile(S_pad, C, dsize, x_cap)
        out3 = _ffm_fused(x3, w1, b1, w2, b2, s_tile=s_tile, true_s=S,
                          vmem_limit=vmem_limit)
    else:
        # Two passes: kernel B holds in+out double-buffered = 4 blocks.
        x_cap = min(stream_cap, budget // 5)
        s_tile = _pick_spatial_tile(S_pad, C, dsize, x_cap)
        sums = _pool_sums(x3, s_tile=s_tile, vmem_limit=vmem_limit)  # (B,C,1)
        pooled = sums[:, :, 0] * (1.0 / float(S))                    # (B, C)
        h = jnp.maximum(pooled @ w1.T + b1[:, 0], 0.0)
        g = jax.nn.sigmoid(h @ w2.T + b2[:, 0])
        gate = (1.0 + g)[:, :, None].astype(jnp.float32)             # (B, C, 1)
        out3 = _apply_gate(x3, gate, s_tile=s_tile, vmem_limit=vmem_limit)

    if S_pad != S:
        out3 = out3[:, :, :S]
    return out3.reshape(B, C, H, W)


def init_params(key, C):
    k1, k2, k3, k4 = jax.random.split(key, 4)
    std = 1.0 / jnp.sqrt(float(C))
    return {
        "w1": std * jax.random.normal(k1, (C, C, 1, 1), jnp.float32),
        "b1": 0.1 * jax.random.normal(k2, (C,), jnp.float32),
        "w2": std * jax.random.normal(k3, (C, C, 1, 1), jnp.float32),
        "b2": 0.1 * jax.random.normal(k4, (C,), jnp.float32),
    }


def reference_forward(x, params):
    B, C, H, W = x.shape
    w1 = params["w1"].reshape(C, C)
    w2 = params["w2"].reshape(C, C)
    pooled = jnp.mean(x, axis=(2, 3))                              # (B, C)
    h = jnp.maximum(pooled @ w1.T + params["b1"], 0.0)
    g = jax.nn.sigmoid(h @ w2.T + params["b2"])                    # (B, C)
    return x * g[:, :, None, None] + x


if __name__ == "__main__":
    key = jax.random.PRNGKey(0)
    kx, kp, kx2, kp2 = jax.random.split(key, 4)

    # Case 1: small, 128-multiple spatial — exercises the fused single-pass
    # path and the two-pass fallback path (forced).
    B, C, H, W = 2, 4, 16, 16
    x = jax.random.normal(kx, (B, C, H, W), jnp.float32)
    params = init_params(kp, C)

    ref = jax.block_until_ready(reference_forward(x, params))
    out_fused = jax.block_until_ready(ffm_forward(x, params))
    out_two = jax.block_until_ready(ffm_forward(x, params, force_two_pass=True))

    assert out_fused.shape == (B, C, H, W)
    err_f = float(jnp.max(jnp.abs(out_fused - ref)))
    err_t = float(jnp.max(jnp.abs(out_two - ref)))
    assert err_f < 1e-3, f"fused path mismatch vs reference: {err_f}"
    assert err_t < 1e-3, f"two-pass path mismatch vs reference: {err_t}"

    # Case 2: non-128-multiple spatial (padding path) with B=1.
    B2, C2, H2, W2 = 1, 8, 10, 10
    x2 = jax.random.normal(kx2, (B2, C2, H2, W2), jnp.float32)
    params2 = init_params(kp2, C2)
    ref2 = jax.block_until_ready(reference_forward(x2, params2))
    out2 = jax.block_until_ready(ffm_forward(x2, params2))
    err_p = float(jnp.max(jnp.abs(out2 - ref2)))
    assert err_p < 1e-3, f"padded path mismatch vs reference: {err_p}"

    print("KERNEL_OK")
</pallas_src>

<mosaic_0001>
module attributes {stable_mosaic.version = 11 : i64} {
  func.func @_ffm_fused_kernel(%arg0: i32, %arg1: i32, %arg2: memref<1x4x256xf32, #tpu.memory_space<vmem>>, %arg3: memref<4x4xf32, #tpu.memory_space<vmem>>, %arg4: memref<4x1xf32, #tpu.memory_space<vmem>>, %arg5: memref<4x4xf32, #tpu.memory_space<vmem>>, %arg6: memref<4x1xf32, #tpu.memory_space<vmem>>, %arg7: memref<1x4x256xf32, #tpu.memory_space<vmem>>, %arg8: memref<4x1xf32, #tpu.memory_space<vmem>>) attributes {dimension_semantics = [#tpu.dimension_semantics<parallel>, #tpu.dimension_semantics<arbitrary>], iteration_bounds = array<i64: 2, 1>, scalar_prefetch = 0 : i64, scratch_operands = 1 : i64, tpu.core_type = #tpu.core_type<tc>, window_params = [{transform_indices = @transform_0, window_bounds = array<i64: 1, 4, 256>}, {pipeline_mode = #tpu.pipeline_mode<synchronous>, transform_indices = @transform_1, window_bounds = array<i64: 4, 4>}, {pipeline_mode = #tpu.pipeline_mode<synchronous>, transform_indices = @transform_2, window_bounds = array<i64: 4, 1>}, {pipeline_mode = #tpu.pipeline_mode<synchronous>, transform_indices = @transform_3, window_bounds = array<i64: 4, 4>}, {pipeline_mode = #tpu.pipeline_mode<synchronous>, transform_indices = @transform_4, window_bounds = array<i64: 4, 1>}, {transform_indices = @transform_5, window_bounds = array<i64: 1, 4, 256>}]} {
    %c0_i32 = arith.constant 0 : i32
    %0 = arith.cmpi eq, %arg1, %c0_i32 : i32
    %1 = arith.extui %0 : i1 to i32
    %c0_i32_0 = arith.constant 0 : i32
    %2 = arith.cmpi ne, %1, %c0_i32_0 : i32
    scf.if %2 {
      %cst_11 = arith.constant 0.000000e+00 : f32
      %19 = vector.broadcast %cst_11 : f32 to vector<4x1xf32>
      %c0_12 = arith.constant 0 : index
      %c0_13 = arith.constant 0 : index
      %20 = vector.load %arg8[%c0_12, %c0_13] : memref<4x1xf32, #tpu.memory_space<vmem>>, vector<4x1xf32>
      tpu.vector_store %arg8[%c0_12, %c0_13], %19 {strides = array<i32>} : memref<4x1xf32, #tpu.memory_space<vmem>>, vector<4x1xf32>,
    } else {
    }
    %c0 = arith.constant 0 : index
    %c0_1 = arith.constant 0 : index
    %c0_2 = arith.constant 0 : index
    %3 = vector.load %arg2[%c0, %c0_1, %c0_2] : memref<1x4x256xf32, #tpu.memory_space<vmem>>, vector<1x4x256xf32>
    %4 = vector.shape_cast %3 : vector<1x4x256xf32> to vector<4x256xf32>
    %c0_3 = arith.constant 0 : index
    %c0_4 = arith.constant 0 : index
    %5 = vector.load %arg8[%c0_3, %c0_4] : memref<4x1xf32, #tpu.memory_space<vmem>>, vector<4x1xf32>
    %cst = arith.constant dense<0.000000e+00> : vector<4xf32>
    %6 = vector.multi_reduction <add>, %4, %cst [1] : vector<4x256xf32> to vector<4xf32>
    %7 = vector.shape_cast %6 : vector<4xf32> to vector<4x1xf32>
    %8 = arith.addf %5, %7 : vector<4x1xf32>
    %c0_5 = arith.constant 0 : index
    %c0_6 = arith.constant 0 : index
    %9 = vector.load %arg8[%c0_5, %c0_6] : memref<4x1xf32, #tpu.memory_space<vmem>>, vector<4x1xf32>
    tpu.vector_store %arg8[%c0_5, %c0_6], %8 {strides = array<i32>} : memref<4x1xf32, #tpu.memory_space<vmem>>, vector<4x1xf32>,
    %c256_i32 = arith.constant 256 : i32
    %10 = arith.muli %arg1, %c256_i32 : i32
    %11 = tpu.assume_multiple %10, 128 : i32
    %c0_7 = arith.constant 0 : index
    %c0_8 = arith.constant 0 : index
    %12 = arith.index_cast %11 : i32 to index
    %13 = vector.load %arg7[%c0_7, %c0_8, %12] : memref<1x4x256xf32, #tpu.memory_space<vmem>>, vector<1x4x256xf32>
    %14 = vector.shape_cast %13 : vector<1x4x256xf32> to vector<4x256xf32>
    %15 = vector.shape_cast %4 : vector<4x256xf32> to vector<1x4x256xf32>
    tpu.vector_store %arg7[%c0_7, %c0_8, %12], %15 {strides = array<i32>} : memref<1x4x256xf32, #tpu.memory_space<vmem>>, vector<1x4x256xf32>,
    %c0_i32_9 = arith.constant 0 : i32
    %16 = arith.cmpi eq, %arg1, %c0_i32_9 : i32
    %17 = arith.extui %16 : i1 to i32
    %c0_i32_10 = arith.constant 0 : i32
    %18 = arith.cmpi ne, %17, %c0_i32_10 : i32
    scf.if %18 {
      %c0_11 = arith.constant 0 : index
      %c0_12 = arith.constant 0 : index
      %19 = vector.load %arg8[%c0_11, %c0_12] : memref<4x1xf32, #tpu.memory_space<vmem>>, vector<4x1xf32>
      %cst_13 = arith.constant 3.906250e-03 : f32
      %20 = vector.broadcast %cst_13 : f32 to vector<4x1xf32>
      %21 = arith.mulf %19, %20 : vector<4x1xf32>
      %c0_14 = arith.constant 0 : index
      %c0_15 = arith.constant 0 : index
      %22 = vector.load %arg3[%c0_14, %c0_15] : memref<4x4xf32, #tpu.memory_space<vmem>>, vector<4x4xf32>
      %cst_16 = arith.constant dense<0.000000e+00> : vector<4x1xf32>
      %23 = tpu.matmul %22, %21, %cst_16 {dimension_numbers = #tpu.dot_dimension_numbers<[1], [0], [0], [1], [0, 0, 1, 1], [], []>} : vector<4x4xf32>, vector<4x1xf32>, vector<4x1xf32> -> vector<4x1xf32>
      %c0_17 = arith.constant 0 : index
      %c0_18 = arith.constant 0 : index
      %24 = vector.load %arg4[%c0_17, %c0_18] : memref<4x1xf32, #tpu.memory_space<vmem>>, vector<4x1xf32>
      %25 = arith.addf %23, %24 : vector<4x1xf32>
      %cst_19 = arith.constant 0.000000e+00 : f32
      %26 = vector.broadcast %cst_19 : f32 to vector<4x1xf32>
      %27 = arith.maximumf %25, %26 : vector<4x1xf32>
      %c0_20 = arith.constant 0 : index
      %c0_21 = arith.constant 0 : index
      %28 = vector.load %arg5[%c0_20, %c0_21] : memref<4x4xf32, #tpu.memory_space<vmem>>, vector<4x4xf32>
      %cst_22 = arith.constant dense<0.000000e+00> : vector<4x1xf32>
      %29 = tpu.matmul %28, %27, %cst_22 {dimension_numbers = #tpu.dot_dimension_numbers<[1], [0], [0], [1], [0, 0, 1, 1], [], []>} : vector<4x4xf32>, vector<4x1xf32>, vector<4x1xf32> -> vector<4x1xf32>
      %c0_23 = arith.constant 0 : index
      %c0_24 = arith.constant 0 : index
      %30 = vector.load %arg6[%c0_23, %c0_24] : memref<4x1xf32, #tpu.memory_space<vmem>>, vector<4x1xf32>
      %31 = arith.addf %29, %30 : vector<4x1xf32>
      %32 = arith.negf %31 : vector<4x1xf32>
      %33 = math.exp %32 : vector<4x1xf32>
      %cst_25 = arith.constant 1.000000e+00 : f32
      %34 = vector.broadcast %cst_25 : f32 to vector<4x1xf32>
      %35 = arith.addf %34, %33 : vector<4x1xf32>
      %36 = arith.divf %34, %35 : vector<4x1xf32>
      %cst_26 = arith.constant 1.000000e+00 : f32
      %37 = vector.broadcast %cst_26 : f32 to vector<4x1xf32>
      %38 = arith.addf %37, %36 : vector<4x1xf32>
      %c0_27 = arith.constant 0 : index
      %c0_28 = arith.constant 0 : index
      %c0_29 = arith.constant 0 : index
      %39 = vector.load %arg7[%c0_27, %c0_28, %c0_29] : memref<1x4x256xf32, #tpu.memory_space<vmem>>, vector<1x4x256xf32>
      %40 = vector.shape_cast %39 : vector<1x4x256xf32> to vector<4x256xf32>
      %41 = vector.broadcast %38 : vector<4x1xf32> to vector<4x256xf32>
      %42 = arith.mulf %40, %41 : vector<4x256xf32>
      %c0_30 = arith.constant 0 : index
      %c0_31 = arith.constant 0 : index
      %c0_32 = arith.constant 0 : index
      %43 = vector.load %arg7[%c0_30, %c0_31, %c0_32] : memref<1x4x256xf32, #tpu.memory_space<vmem>>, vector<1x4x256xf32>
      %44 = vector.shape_cast %43 : vector<1x4x256xf32> to vector<4x256xf32>
      %45 = vector.shape_cast %42 : vector<4x256xf32> to vector<1x4x256xf32>
      tpu.vector_store %arg7[%c0_30, %c0_31, %c0_32], %45 {strides = array<i32>} : memref<1x4x256xf32, #tpu.memory_space<vmem>>, vector<1x4x256xf32>,
    } else {
    }
    return
  }
  func.func @transform_0(%arg0: i32, %arg1: i32) -> (i32, i32, i32) {
    %c0_i32 = arith.constant 0 : i32
    %c0_i32_0 = arith.constant 0 : i32
    return %arg0, %c0_i32, %arg1 : i32, i32, i32
  }
  func.func @transform_1(%arg0: i32, %arg1: i32) -> (i32, i32) {
    %c0_i32 = arith.constant 0 : i32
    %c0_i32_0 = arith.constant 0 : i32
    %c0_i32_1 = arith.constant 0 : i32
    return %c0_i32, %c0_i32_0 : i32, i32
  }
  func.func @transform_2(%arg0: i32, %arg1: i32) -> (i32, i32) {
    %c0_i32 = arith.constant 0 : i32
    %c0_i32_0 = arith.constant 0 : i32
    %c0_i32_1 = arith.constant 0 : i32
    return %c0_i32, %c0_i32_0 : i32, i32
  }
  func.func @transform_3(%arg0: i32, %arg1: i32) -> (i32, i32) {
    %c0_i32 = arith.constant 0 : i32
    %c0_i32_0 = arith.constant 0 : i32
    %c0_i32_1 = arith.constant 0 : i32
    return %c0_i32, %c0_i32_0 : i32, i32
  }
  func.func @transform_4(%arg0: i32, %arg1: i32) -> (i32, i32) {
    %c0_i32 = arith.constant 0 : i32
    %c0_i32_0 = arith.constant 0 : i32
    %c0_i32_1 = arith.constant 0 : i32
    return %c0_i32, %c0_i32_0 : i32, i32
  }
  func.func @transform_5(%arg0: i32, %arg1: i32) -> (i32, i32, i32) {
    %c0_i32 = arith.constant 0 : i32
    %c0_i32_0 = arith.constant 0 : i32
    %c0_i32_1 = arith.constant 0 : i32
    return %arg0, %c0_i32, %c0_i32_0 : i32, i32, i32
  }
}

</mosaic_0001>

<llo_original>
// kernel: ffm_forward.1
$region0: #{ffm_forward.1}
  #allocation0 [shape = 'u32[]', space=smem, size = 0x4, offset = 0x4, fixed_abs, tag = 'smem constant byte address 0x4 - core index']
  #allocation1 [shape = 'u32[144,128]{1,0:T(1,128)}', space=vmem, size = 0x12000, scoped, tag = 'internal scratch']
  #allocation2 [shape = 'f32[4,1]{1,0:T(4,128)}', space=vmem, size = 0x800, scoped, tag = 'scratch operand']
  %s0 = inlined_call_operand.vmem [shape: f32[2,4,256], index: 0, kind: input, shape index: {}, may-alias: {0,5}]
  %s1 = inlined_call_operand.vmem [shape: f32[4,4], index: 1, kind: input, shape index: {}]
  %s2 = inlined_call_operand.vmem [shape: f32[4,1], index: 2, kind: input, shape index: {}]
  %s3 = inlined_call_operand.vmem [shape: f32[4,4], index: 3, kind: input, shape index: {}]
  %s4 = inlined_call_operand.vmem [shape: f32[4,1], index: 4, kind: input, shape index: {}]
  %s5 = inlined_call_operand.vmem [shape: f32[2,4,256], index: 5, kind: output, shape index: {}, may-alias: {0,5}]
  %s6 = sld [smem:[#allocation0]]
  $region61: #{ffm_forward.1} parent=0
    _
  %s8 = ssub.s32 1, %s6
  %s9 = scalar_select 0, %s8, %s6
  loop: start=0, step=1, limit=4
  $region2: #{ffm_forward.1} parent=0 // loop_pre_header
    _
  $region3: #{ffm_forward.1} parent=0 // loop_header
    %s11 = sphi 0, %s15
    %p12 = scmp.ge.s32.totalorder %s11, 4
    %s18 = sphi 0, %s30
    %s19 = sphi 0, %s26
    %s20 = sphi 0, %s18
    %s21 = sphi 0, %s19
    %s22 = sphi 0, %s20
    %s23 = sphi 0, %s21
    %s35 = sphi 0, %s37
    %s38 = sphi 0, %s35
    %s39 = sphi 0, %s38
    %s55 = sphi 0, %s39
    %s59 = sphi 0, %s59
    %s61 = sphi 0, %s59
    %s62 = sphi 0, %s61
    %s76 = sphi 0, %s62
    %s80 = sphi 0, %s80
    %s82 = sphi 0, %s80
    %s83 = sphi 0, %s82
    %s97 = sphi 0, %s83
    %s101 = sphi 0, %s101
    %s103 = sphi 0, %s101
    %s104 = sphi 0, %s103
    %s118 = sphi 0, %s104
    %s122 = sphi 0, %s122
    %s124 = sphi 0, %s122
    %s125 = sphi 0, %s124
    %s139 = sphi 0, %s125
    %s145 = sphi 0, %s147
    %s148 = sphi 0, %s145
    %s149 = sphi 0, %s148
    %s165 = sphi 0, %s149
  $region4: #{ffm_forward.1} parent=0 // loop_header_branch
    %14 = sbr.rel (%p12) target = $region8
  $region5: #{ffm_forward.1} parent=0 // loop_body
    %s16 = ssub.s32 %s11, 1
    %s17 = ssub.s32 %s11, 2
    %s24 = sadd.s32 1, %s19
    %p25 = scmp.ge.s32.totalorder %s24, 1
    %s26 = scalar_select %p25, 0, %s24
    %s27 = sadd.s32 1, %s18
    %s28 = scalar_select %p25, %s27, %s18
    %p29 = scmp.ge.s32.totalorder %s28, 2
    %s30 = scalar_select %p29, 0, %s28
    %s31 = ssub.s32 %s18, %s30
    %s32 = ssub.s32 %s19, %s26
    %s33 = sor.u32 %s31, %s32
    %p34 = scmp.eq.s32.totalorder %s33, 0
    %s36 = sadd.s32 %s35, 1
    %s37 = scalar_select %p34, %s35, %s36
    %p40 = pneg %p34
    %p41 = scmp.eq.s32.totalorder %s11, 1
    %p42 = por %p40, %p41
    %p43 = scmp.ne.s32.totalorder %s35, %s38
    %p44 = scmp.eq.s32.totalorder %s11, 0
    %p45 = por %p43, %p44
    %p46 = scmp.ne.s32.totalorder %s35, %s38
    %p47 = scmp.eq.s32.totalorder %s16, 1
    %p48 = por %p46, %p47
    %p49 = scmp.ne.s32.totalorder %s38, %s39
    %p50 = scmp.eq.s32.totalorder %s16, 0
    %p51 = por %p49, %p50
    %p52 = scmp.ne.s32.totalorder %s38, %s39
    %p53 = scmp.eq.s32.totalorder %s17, 1
    %p54 = por %p52, %p53
    %p56 = scmp.ne.s32.totalorder %s39, %s55
    %p57 = scmp.eq.s32.totalorder %s17, 0
    %p58 = por %p56, %p57
    %s60 = sadd.s32 %s59, 1
    %p63 = scmp.eq.s32.totalorder %s11, 1
    %p64 = scmp.ne.s32.totalorder %s59, %s61
    %p65 = scmp.eq.s32.totalorder %s11, 0
    %p66 = por %p64, %p65
    %p67 = scmp.ne.s32.totalorder %s59, %s61
    %p68 = scmp.eq.s32.totalorder %s16, 1
    %p69 = por %p67, %p68
    %p70 = scmp.ne.s32.totalorder %s61, %s62
    %p71 = scmp.eq.s32.totalorder %s16, 0
    %p72 = por %p70, %p71
    %p73 = scmp.ne.s32.totalorder %s61, %s62
    %p74 = scmp.eq.s32.totalorder %s17, 1
    %p75 = por %p73, %p74
    %p77 = scmp.ne.s32.totalorder %s62, %s76
    %p78 = scmp.eq.s32.totalorder %s17, 0
    %p79 = por %p77, %p78
    %s81 = sadd.s32 %s80, 1
    %p84 = scmp.eq.s32.totalorder %s11, 1
    %p85 = scmp.ne.s32.totalorder %s80, %s82
    %p86 = scmp.eq.s32.totalorder %s11, 0
    %p87 = por %p85, %p86
    %p88 = scmp.ne.s32.totalorder %s80, %s82
    %p89 = scmp.eq.s32.totalorder %s16, 1
    %p90 = por %p88, %p89
    %p91 = scmp.ne.s32.totalorder %s82, %s83
    %p92 = scmp.eq.s32.totalorder %s16, 0
    %p93 = por %p91, %p92
    %p94 = scmp.ne.s32.totalorder %s82, %s83
    %p95 = scmp.eq.s32.totalorder %s17, 1
    %p96 = por %p94, %p95
    %p98 = scmp.ne.s32.totalorder %s83, %s97
    %p99 = scmp.eq.s32.totalorder %s17, 0
    %p100 = por %p98, %p99
    %s102 = sadd.s32 %s101, 1
    %p105 = scmp.eq.s32.totalorder %s11, 1
    %p106 = scmp.ne.s32.totalorder %s101, %s103
    %p107 = scmp.eq.s32.totalorder %s11, 0
    %p108 = por %p106, %p107
    %p109 = scmp.ne.s32.totalorder %s101, %s103
    %p110 = scmp.eq.s32.totalorder %s16, 1
    %p111 = por %p109, %p110
    %p112 = scmp.ne.s32.totalorder %s103, %s104
    %p113 = scmp.eq.s32.totalorder %s16, 0
    %p114 = por %p112, %p113
    %p115 = scmp.ne.s32.totalorder %s103, %s104
    %p116 = scmp.eq.s32.totalorder %s17, 1
    %p117 = por %p115, %p116
    %p119 = scmp.ne.s32.totalorder %s104, %s118
    %p120 = scmp.eq.s32.totalorder %s17, 0
    %p121 = por %p119, %p120
    %s123 = sadd.s32 %s122, 1
    %p126 = scmp.eq.s32.totalorder %s11, 1
    %p127 = scmp.ne.s32.totalorder %s122, %s124
    %p128 = scmp.eq.s32.totalorder %s11, 0
    %p129 = por %p127, %p128
    %p130 = scmp.ne.s32.totalorder %s122, %s124
    %p131 = scmp.eq.s32.totalorder %s16, 1
    %p132 = por %p130, %p131
    %p133 = scmp.ne.s32.totalorder %s124, %s125
    %p134 = scmp.eq.s32.totalorder %s16, 0
    %p135 = por %p133, %p134
    %p136 = scmp.ne.s32.totalorder %s124, %s125
    %p137 = scmp.eq.s32.totalorder %s17, 1
    %p138 = por %p136, %p137
    %p140 = scmp.ne.s32.totalorder %s125, %s139
    %p141 = scmp.eq.s32.totalorder %s17, 0
    %p142 = por %p140, %p141
    %s143 = ssub.s32 %s18, %s30
    %p144 = scmp.eq.s32.totalorder %s143, 0
    %s146 = sadd.s32 %s145, 1
    %s147 = scalar_select %p144, %s145, %s146
    %p150 = pneg %p144
    %p151 = scmp.eq.s32.totalorder %s11, 1
    %p152 = por %p150, %p151
    %p153 = scmp.ne.s32.totalorder %s145, %s148
    %p154 = scmp.eq.s32.totalorder %s11, 0
    %p155 = por %p153, %p154
    %p156 = scmp.ne.s32.totalorder %s145, %s148
    %p157 = scmp.eq.s32.totalorder %s16, 1
    %p158 = por %p156, %p157
    %p159 = scmp.ne.s32.totalorder %s148, %s149
    %p160 = scmp.eq.s32.totalorder %s16, 0
    %p161 = por %p159, %p160
    %p162 = scmp.ne.s32.totalorder %s148, %s149
    %p163 = scmp.eq.s32.totalorder %s17, 1
    %p164 = por %p162, %p163
    %p166 = scmp.ne.s32.totalorder %s149, %s165
    %p167 = scmp.eq.s32.totalorder %s17, 0
    %p168 = por %p166, %p167
    %p169 = scmp.le.s32.totalorder 1, %s11
    %p170 = scmp.lt.s32.totalorder %s11, 3
    %p171 = pnand %p169, %p170
    %p172 = pneg %p171
    // Predicated region
    $region9: #{ffm_forward.1} parent=5 // pred_check
      _
    $region10: #{ffm_forward.1} parent=5 // pred_check_branch
      %174 = sbr.rel (%p171) target = $region12
    $region11: #{ffm_forward.1} parent=5 // pred_region
      %s175 = ssub.s32 %s11, 1
      // Predicated region
      $region13: #{ffm_forward.1} parent=11 // pred_check
        %p176 = pneg %p72
      $region14: #{ffm_forward.1} parent=11 // pred_check_branch
        %178 = sbr.rel (%p176) target = $region16
      $region15: #{ffm_forward.1} parent=11 // pred_region
        _
      $region16: #{ffm_forward.1} parent=11 // pred_fallthru
        _
      // Predicated region
      $region17: #{ffm_forward.1} parent=11 // pred_check
        %p179 = pneg %p93
      $region18: #{ffm_forward.1} parent=11 // pred_check_branch
        %181 = sbr.rel (%p179) target = $region20
      $region19: #{ffm_forward.1} parent=11 // pred_region
        _
      $region20: #{ffm_forward.1} parent=11 // pred_fallthru
        _
      // Predicated region
      $region21: #{ffm_forward.1} parent=11 // pred_check
        %p182 = pneg %p114
      $region22: #{ffm_forward.1} parent=11 // pred_check_branch
        %184 = sbr.rel (%p182) target = $region24
      $region23: #{ffm_forward.1} parent=11 // pred_region
        _
      $region24: #{ffm_forward.1} parent=11 // pred_fallthru
        _
      // Predicated region
      $region25: #{ffm_forward.1} parent=11 // pred_check
        %p185 = pneg %p135
      $region26: #{ffm_forward.1} parent=11 // pred_check_branch
        %187 = sbr.rel (%p185) target = $region28
      $region27: #{ffm_forward.1} parent=11 // pred_region
        _
      $region28: #{ffm_forward.1} parent=11 // pred_fallthru
        _
    $region12: #{ffm_forward.1} parent=5 // pred_fallthru
      _
    %p188 = scmp.lt.s32.totalorder %s11, 2
    // Predicated region
    $region29: #{ffm_forward.1} parent=5 // pred_check
      %p189 = pneg %p188
    $region30: #{ffm_forward.1} parent=5 // pred_check_branch
      %191 = sbr.rel (%p189) target = $region32
    $region31: #{ffm_forward.1} parent=5 // pred_region
      // Predicated region
      $region33: #{ffm_forward.1} parent=31 // pred_check
        %p192 = pneg %p45
      $region34: #{ffm_forward.1} parent=31 // pred_check_branch
        %194 = sbr.rel (%p192) target = $region36
      $region35: #{ffm_forward.1} parent=31 // pred_region
        %s195 = smul.u32 2, %s19
        %p196 = scmp.lt.s32.totalorder %s18, 1
        %s197 = scalar_select %p196, %s18, 1
        %p198 = scmp.lt.s32.totalorder %s195, 1
        %s199 = scalar_select %p198, %s195, 1
        %s200 = smul.addr %s197, 2
        %s201 = sadd.s32 %s199, %s200
        %s202 = smul.addr %s201, 4
        %s203 = scalar_lea.vmem %s0, %s202
        %s204 = smul.u32 2, %s19
      $region36: #{ffm_forward.1} parent=31 // pred_fallthru
        _
    $region32: #{ffm_forward.1} parent=5 // pred_fallthru
      _
    %p205 = scmp.le.s32.totalorder 1, %s11
    %p206 = scmp.lt.s32.totalorder %s11, 3
    %p207 = pnand %p205, %p206
    %p208 = pneg %p207
    // Predicated region
    $region37: #{ffm_forward.1} parent=5 // pred_check
      _
    $region38: #{ffm_forward.1} parent=5 // pred_check_branch
      %210 = sbr.rel (%p207) target = $region40
    $region39: #{ffm_forward.1} parent=5 // pred_region
      %s211 = ssub.s32 %s11, 1
      %s212 = smul.u32 2, %s21
      %p213 = scmp.lt.s32.totalorder %s20, 1
      %s214 = scalar_select %p213, %s20, 1
      %p215 = scmp.lt.s32.totalorder %s212, 1
      %s216 = scalar_select %p215, %s212, 1
      %s217 = smul.addr %s214, 2
      %s218 = sadd.s32 %s216, %s217
      %s219 = smul.addr %s218, 4
      %s220 = scalar_lea.vmem %s0, %s219
      %p221 = pneg %p51
      %p222 = pneg %p48
      %p223 = pneg %p72
      %p224 = pneg %p69
      %p225 = pneg %p93
      %p226 = pneg %p90
      %p227 = pneg %p114
      %p228 = pneg %p111
      %p229 = pneg %p135
      %p230 = pneg %p132
      %p231 = pneg %p161
      %p232 = pneg %p158
      %p233 = scmp.lt.s32.totalorder %s20, 1
      %s234 = scalar_select %p233, %s20, 1
      %s235 = smul.addr %s234, 2
      %s236 = smul.addr %s235, 4
      %s237 = scalar_lea.vmem %s5, %s236
      %s238 = smul.u32 2, %s21
      %p239 = scmp.lt.s32.totalorder %s20, 1
      %s240 = scalar_select %p239, %s20, 1
      %p241 = scmp.lt.s32.totalorder %s238, 1
      %s242 = scalar_select %p241, %s238, 1
      %s243 = smul.addr %s240, 2
      %s244 = sadd.s32 %s242, %s243
      %s245 = smul.addr %s244, 4
      %s246 = scalar_lea.vmem %s0, %s245
      %s247 = smul.u32 2, %s21
      %p248 = scmp.lt.s32.totalorder %s20, 1
      %s249 = scalar_select %p248, %s20, 1
      %s250 = smul.addr %s249, 2
      %s251 = smul.addr %s250, 4
      %s252 = scalar_lea.vmem %s5, %s251
      %p253 = scmp.eq.s32.totalorder %s21, 0
      // Predicated region
      $region41: #{ffm_forward.1} parent=39 // pred_check
        %p254 = pneg %p253
      $region42: #{ffm_forward.1} parent=39 // pred_check_branch
        %256 = sbr.rel (%p254) target = $region44
      $region43: #{ffm_forward.1} parent=39 // pred_region
        %vm257 = vcmask 3072
        %258 = vst.msk [vmem:[#allocation2] sm:$0xf] %vm257, 0.0
      $region44: #{ffm_forward.1} parent=39 // pred_fallthru
        _
      %v259 = vld [vmem:[%s246] sm:$0xff]
      %v260 = vld [vmem:[#allocation2] sm:$0xf]
      %v262 = vcombine.high %v259, %v259
      %vm264 = vcmask 1043456
      %v265 = vsel %vm264, %v259, 0.0
      %v266 = vsel %vm264, %v262, 0.0
      %v267 = vadd.f32 %v265, %v266
      %268 = vadd.xlane.f32.xlu0 %v267
      %v269 = vpop.xlane.xlu0 %268
      %v270 = vadd.f32 %v260, %v269
      %vm271 = vcmask 3072
      %272 = vst.msk [vmem:[#allocation2] sm:$0xf] %vm271, %v270
      %s273 = smul.u32 %s21, 256
      %s274 = sshra.s32 %s273, 7
      %s275 = sand.u32 %s273, 127
      %s276 = smul.addr %s274, 4
      %s277 = scalar_lea.vmem %s252, %s276
      %278 = vst [vmem:[%s277] sm:$0xff] %v259
      // Predicated region
      $region45: #{ffm_forward.1} parent=39 // pred_check
        %p279 = pneg %p253
      $region46: #{ffm_forward.1} parent=39 // pred_check_branch
        %281 = sbr.rel (%p279) target = $region48
      $region47: #{ffm_forward.1} parent=39 // pred_region
        %v282 = vld [vmem:[#allocation2] sm:$0xf]
        %v283 = vmul.f32 %v282, 0.00390625
        %v284 = vld [vmem:[%s1] sm:$0xf]
        %v285 = vld [vmem:[%s2] sm:$0xf]
        %vm286 = vcmask 31744
        %v288 = vsel %vm286, %v284, 0
        %v291 = vsel %vm264, %v283, 0
        %293 = vmatprep.subr.mxu0 0.0
        %294 = vmatpush1.msra.mxu0 %v291
        %295 = vmatprep.subr.mxu0 0.0
        %296 = vmatpush1.msra.mxu0 0.0
        %297 = vmatprep.subr.mxu0 0.0
        %298 = vmatpush1.msra.mxu0 0.0
        %299 = vmatprep.subr.mxu0 0.0
        %300 = vmatpush1.msra.mxu0 0.0
        %301 = vmatprep.subr.mxu0 0.0
        %302 = vmatpush1.msra.mxu0 0.0
        %303 = vmatprep.subr.mxu0 0.0
        %304 = vmatpush1.msra.mxu0 0.0
        %305 = vmatprep.subr.mxu0 0.0
        %306 = vmatpush1.msra.mxu0 0.0
        %307 = vmatprep.subr.mxu0 0.0
        %308 = vmatpush1.msra.mxu0 0.0
        %309 = vmatprep.subr.mxu0 0.0
        %310 = vmatpush1.msra.mxu0 0.0
        %311 = vmatprep.subr.mxu0 0.0
        %312 = vmatpush1.msra.mxu0 0.0
        %313 = vmatprep.subr.mxu0 0.0
        %314 = vmatpush1.msra.mxu0 0.0
        %315 = vmatprep.subr.mxu0 0.0
        %316 = vmatpush1.msra.mxu0 0.0
        %317 = vmatprep.subr.mxu0 0.0
        %318 = vmatpush1.msra.mxu0 0.0
        %319 = vmatprep.subr.mxu0 0.0
        %320 = vmatpush1.msra.mxu0 0.0
        %321 = vmatprep.subr.mxu0 0.0
        %322 = vmatpush1.msra.mxu0 0.0
        %323 = vmatprep.subr.mxu0 0.0
        %324 = vmatpush1.msra.mxu0 0.0
        %325 = vmatprep.subr.mxu0 0.0
        %326 = vmatpush1.msra.mxu0 0.0
        %327 = vmatprep.subr.mxu0 0.0
        %328 = vmatpush1.msra.mxu0 0.0
        %329 = vmatprep.subr.mxu0 0.0
        %330 = vmatpush1.msra.mxu0 0.0
        %331 = vmatprep.subr.mxu0 0.0
        %332 = vmatpush1.msra.mxu0 0.0
        %333 = vmatprep.subr.mxu0 0.0
        %334 = vmatpush1.msra.mxu0 0.0
        %335 = vmatprep.subr.mxu0 0.0
        %336 = vmatpush1.msra.mxu0 0.0
        %337 = vmatprep.subr.mxu0 0.0
        %338 = vmatpush1.msra.mxu0 0.0
        %339 = vmatprep.subr.mxu0 0.0
        %340 = vmatpush1.msra.mxu0 0.0
        %341 = vmatprep.subr.mxu0 0.0
        %342 = vmatpush1.msra.mxu0 0.0
        %343 = vmatprep.subr.mxu0 0.0
        %344 = vmatpush1.msra.mxu0 0.0
        %345 = vmatprep.subr.mxu0 0.0
        %346 = vmatpush1.msra.mxu0 0.0
        %347 = vmatprep.subr.mxu0 0.0
        %348 = vmatpush1.msra.mxu0 0.0
        %349 = vmatprep.subr.mxu0 0.0
        %350 = vmatpush1.msra.mxu0 0.0
        %351 = vmatprep.subr.mxu0 0.0
        %352 = vmatpush1.msra.mxu0 0.0
        %353 = vmatprep.subr.mxu0 0.0
        %354 = vmatpush1.msra.mxu0 0.0
        %355 = vmatprep.subr.mxu0 0.0
        %356 = vmatpush1.msra.mxu0 0.0
        %357 = vmatprep.mubr.f32.mxu0 0.0
        %358 = vmatmul.mubr.f32.gmra.mrb[0].mxu0 %v288
        %v359 = vpop.f32.mrb[0].mxu0
        %v360 = vadd.f32 %v285, %v359
        %v361 = vpop.f32.mrb[0].mxu0
        %362 = vdwg.mxu0
        %v363 = vmax.f32 %v360, 0.0
        %v364 = vld [vmem:[%s3] sm:$0xf]
        %v365 = vld [vmem:[%s4] sm:$0xf]
        %v367 = vsel %vm286, %v364, 0
        %v370 = vsel %vm264, %v363, 0
        %372 = vmatprep.subr.mxu0 0.0
        %373 = vmatpush1.msra.mxu0 %v370
        %374 = vmatprep.subr.mxu0 0.0
        %375 = vmatpush1.msra.mxu0 0.0
        %376 = vmatprep.subr.mxu0 0.0
        %377 = vmatpush1.msra.mxu0 0.0
        %378 = vmatprep.subr.mxu0 0.0
        %379 = vmatpush1.msra.mxu0 0.0
        %380 = vmatprep.subr.mxu0 0.0
        %381 = vmatpush1.msra.mxu0 0.0
        %382 = vmatprep.subr.mxu0 0.0
        %383 = vmatpush1.msra.mxu0 0.0
        %384 = vmatprep.subr.mxu0 0.0
        %385 = vmatpush1.msra.mxu0 0.0
        %386 = vmatprep.subr.mxu0 0.0
        %387 = vmatpush1.msra.mxu0 0.0
        %388 = vmatprep.subr.mxu0 0.0
        %389 = vmatpush1.msra.mxu0 0.0
        %390 = vmatprep.subr.mxu0 0.0
        %391 = vmatpush1.msra.mxu0 0.0
        %392 = vmatprep.subr.mxu0 0.0
        %393 = vmatpush1.msra.mxu0 0.0
        %394 = vmatprep.subr.mxu0 0.0
        %395 = vmatpush1.msra.mxu0 0.0
        %396 = vmatprep.subr.mxu0 0.0
        %397 = vmatpush1.msra.mxu0 0.0
        %398 = vmatprep.subr.mxu0 0.0
        %399 = vmatpush1.msra.mxu0 0.0
        %400 = vmatprep.subr.mxu0 0.0
        %401 = vmatpush1.msra.mxu0 0.0
        %402 = vmatprep.subr.mxu0 0.0
        %403 = vmatpush1.msra.mxu0 0.0
        %404 = vmatprep.subr.mxu0 0.0
        %405 = vmatpush1.msra.mxu0 0.0
        %406 = vmatprep.subr.mxu0 0.0
        %407 = vmatpush1.msra.mxu0 0.0
        %408 = vmatprep.subr.mxu0 0.0
        %409 = vmatpush1.msra.mxu0 0.0
        %410 = vmatprep.subr.mxu0 0.0
        %411 = vmatpush1.msra.mxu0 0.0
        %412 = vmatprep.subr.mxu0 0.0
        %413 = vmatpush1.msra.mxu0 0.0
        %414 = vmatprep.subr.mxu0 0.0
        %415 = vmatpush1.msra.mxu0 0.0
        %416 = vmatprep.subr.mxu0 0.0
        %417 = vmatpush1.msra.mxu0 0.0
        %418 = vmatprep.subr.mxu0 0.0
        %419 = vmatpush1.msra.mxu0 0.0
        %420 = vmatprep.subr.mxu0 0.0
        %421 = vmatpush1.msra.mxu0 0.0
        %422 = vmatprep.subr.mxu0 0.0
        %423 = vmatpush1.msra.mxu0 0.0
        %424 = vmatprep.subr.mxu0 0.0
        %425 = vmatpush1.msra.mxu0 0.0
        %426 = vmatprep.subr.mxu0 0.0
        %427 = vmatpush1.msra.mxu0 0.0
        %428 = vmatprep.subr.mxu0 0.0
        %429 = vmatpush1.msra.mxu0 0.0
        %430 = vmatprep.subr.mxu0 0.0
        %431 = vmatpush1.msra.mxu0 0.0
        %432 = vmatprep.subr.mxu0 0.0
        %433 = vmatpush1.msra.mxu0 0.0
        %434 = vmatprep.subr.mxu0 0.0
        %435 = vmatpush1.msra.mxu0 0.0
        %436 = vmatprep.mubr.f32.mxu0 0.0
        %437 = vmatmul.mubr.f32.gmra.mrb[0].mxu0 %v367
        %v438 = vpop.f32.mrb[0].mxu0
        %v439 = vadd.f32 %v365, %v438
        %v440 = vpop.f32.mrb[0].mxu0
        %441 = vdwg.mxu0
        %v442 = vxor.u32 %v439, 2147483648
        %v443 = vmul.f32 %v442, 1.442695
        %v444 = vpow.pop %v443
        %v445 = vadd.f32 %v444, 1.0
        %v446 = vrcp.pop %v445
        %v447 = vmul.f32 1.0, %v446
        %v448 = vadd.f32 %v447, 1.0
        %v449 = vld [vmem:[%s252] sm:$0xff]
        %451 = vset.pattern.permute.xlu0 0
        %452 = vperm.xlu0 %451, %v448
        %v453 = vpop.permute.xlu0 %452
        %v455 = vunpack.c.l.s4 839922192
        %v456 = vunpack.c.0.s8 %v455
        %v457 = vlaneseq
        %v458 = vshrl.u32 %v457, 7
        %v459 = vsub.s32 %v456, %v458
        %v460 = vrot.slane %v453, %v459
        %v462 = vmul.f32 %v449, %v460
        %463 = vst [vmem:[%s252] sm:$0xff] %v462
      $region48: #{ffm_forward.1} parent=39 // pred_fallthru
        _
      %p464 = scmp.lt.s32.totalorder %s20, 1
      %s465 = scalar_select %p464, %s20, 1
      %s466 = smul.addr %s465, 2
      %s467 = smul.addr %s466, 4
      %s468 = scalar_lea.vmem %s5, %s467
      // Predicated region
      $region49: #{ffm_forward.1} parent=39 // pred_check
        %p469 = pneg %p158
      $region50: #{ffm_forward.1} parent=39 // pred_check_branch
        %471 = sbr.rel (%p469) target = $region52
      $region51: #{ffm_forward.1} parent=39 // pred_region
        _
      $region52: #{ffm_forward.1} parent=39 // pred_fallthru
        _
    $region40: #{ffm_forward.1} parent=5 // pred_fallthru
      _
    %p472 = scmp.le.s32.totalorder 2, %s11
    // Predicated region
    $region53: #{ffm_forward.1} parent=5 // pred_check
      %p473 = pneg %p472
    $region54: #{ffm_forward.1} parent=5 // pred_check_branch
      %475 = sbr.rel (%p473) target = $region56
    $region55: #{ffm_forward.1} parent=5 // pred_region
      %s476 = ssub.s32 %s11, 2
      // Predicated region
      $region57: #{ffm_forward.1} parent=55 // pred_check
        %p477 = pneg %p164
      $region58: #{ffm_forward.1} parent=55 // pred_check_branch
        %479 = sbr.rel (%p477) target = $region60
      $region59: #{ffm_forward.1} parent=55 // pred_region
        %p480 = scmp.lt.s32.totalorder %s22, 1
        %s481 = scalar_select %p480, %s22, 1
        %s482 = smul.addr %s481, 2
        %s483 = smul.addr %s482, 4
        %s484 = scalar_lea.vmem %s5, %s483
      $region60: #{ffm_forward.1} parent=55 // pred_fallthru
        _
    $region56: #{ffm_forward.1} parent=5 // pred_fallthru
      _
  $region6: #{ffm_forward.1} parent=0 // loop_footer
    %s15 = sadd.s32 1, %s11
  $region7: #{ffm_forward.1} parent=0 // loop_footer_branch
    %10 = sbr.rel target = $region3
  $region8: #{ffm_forward.1} parent=0 // loop_exit
    _

</llo_original>
